<compile_context>
chip_gen: v6e
topology: v6e:2x2x1
jax: 0.10.0
libtpu: 0.0.40
codegen_flags: <defaults>
</compile_context>

<pallas_src>
import jax
import jax.numpy as jnp
import numpy as np
from jax.experimental import pallas as pl
from jax.experimental.pallas import tpu as pltpu

NEG_FILL = float(-2 ** 32 + 1)


def _round_up(n, m):
    return -(-n // m) * m


def attention_seq_kernel(x_ref, wt_ref, b_ref, o_ref):
    bb, t, h = x_ref.shape
    x = x_ref[...]                           # (B_blk, T, H)
    wt = wt_ref[...]                         # (H, H), pre-transposed: (in, out)
    b = b_ref[...]                           # (1, H)

    # Dense + tanh on a flattened (B_blk*T, H) tile (tall M for the MXU).
    x2 = x.reshape(bb * t, h)                # free sublane merge (T % 8 == 0)
    if x2.dtype != wt.dtype:                 # optional low-precision matmul path
        x2 = x2.astype(wt.dtype)
    w = jnp.tanh(
        jnp.dot(x2, wt, preferred_element_type=jnp.float32)
        + b.astype(jnp.float32)
    ).reshape(bb, t, h)                      # (B_blk, T, H) f32

    # Mask: time steps whose features are all-zero contribute nothing.
    mask = jnp.sum(jnp.abs(x), axis=-1, keepdims=True) != 0     # (B_blk, T, 1)

    # Softmax over the time axis.  tanh(.) is bounded in [-1, 1], so exp can
    # never overflow and the running-max subtraction is unnecessary; masked
    # rows get weight exactly 0, identical to the NEG_FILL path (which
    # underflows to 0 in f32).
    e = jnp.where(mask, jnp.exp(w), 0.0)                        # (B_blk, T, H)
    s = jnp.sum(e, axis=1, keepdims=True)                       # (B_blk, 1, H)
    # Degenerate all-masked batch: features are all zero there, so out is 0
    # either way; just avoid 0 * inf.
    s = jnp.where(s > 0.0, s, 1.0)
    attn = e * pl.reciprocal(s, approx=False)

    o_ref[...] = (attn * x).astype(o_ref.dtype)


def _vmem_capacity_bytes():
    try:
        return int(pltpu.get_tpu_info().vmem_capacity_bytes)
    except Exception:
        return 64 << 20          # conservative fallback (v7x per-core VMEM)


def _choose_block_b(batch, t, h, x_item, w_bytes, tile_budget, max_rows):
    """Largest batch block that (a) divides B, (b) keeps >= 4 grid steps when
    the batch allows (2 per v7x TensorCore; extra prefetch/writeback overlap on
    single-core chips), (c) stays under the row cap, and (d) keeps the
    double-buffered x/out blocks PLUS the in-kernel f32 temporaries within the
    VMEM tile budget."""
    min_steps = 4 if batch >= 4 else (2 if batch >= 2 else 1)
    best = 1
    for bb in range(1, batch + 1):
        if batch % bb:
            continue
        if batch // bb < min_steps:
            continue
        if bb * t > max_rows:
            continue
        per_step = (4 * bb * t * h * x_item      # x + out, double-buffered
                    + 3 * bb * t * h * 4)        # logits / e / attn f32 temps
        if per_step + w_bytes > tile_budget:
            continue
        best = bb
    return best


def _block_spec(shape, index_map, buffer_count=None):
    """BlockSpec with optional single/multi-buffering (graceful fallback if
    this jax version does not expose pipeline_mode / pl.Buffered)."""
    if buffer_count is not None and hasattr(pl, "Buffered"):
        try:
            return pl.BlockSpec(shape, index_map,
                                pipeline_mode=pl.Buffered(buffer_count))
        except TypeError:
            pass
    return pl.BlockSpec(shape, index_map)


def attention_seq(features, weight, bias, *, block_b=None, compute_dtype=None,
                  storage_dtype=None, weight_pre_transposed=False):
    """features: [B, T, H]; weight: [H, H] (PyTorch Linear layout [out, in]
    unless weight_pre_transposed=True); bias: [H].

    storage_dtype=jnp.bfloat16 halves x/out HBM traffic (largest lever on this
    bandwidth-bound kernel); compute_dtype=jnp.bfloat16 halves the weight DMA
    and doubles MXU throughput.  Both relax the 1e-5 match with the f32
    PyTorch reference, so the defaults keep everything in f32.
    """
    B, T, H = features.shape

    x = jnp.asarray(features)
    wt = jnp.asarray(weight)
    if not weight_pre_transposed:
        # Hoist to parameter-prep time (pass weight.T and
        # weight_pre_transposed=True) when the same Linear is reused.
        wt = wt.T                                # (H_in, H_out)
    b2 = jnp.asarray(bias).reshape(1, H)

    if storage_dtype is not None:
        x = x.astype(storage_dtype)
    if compute_dtype is not None:
        wt = wt.astype(compute_dtype)
    out_dtype = x.dtype

    # Lane-dense / sublane-aligned padding.  Padded H columns and padded T
    # rows produce exactly-zero output, so slicing them off is exact.
    Hp, Tp = _round_up(H, 128), _round_up(T, 8)
    if Hp != H:
        x = jnp.pad(x, ((0, 0), (0, 0), (0, Hp - H)))
        wt = jnp.pad(wt, ((0, Hp - H), (0, Hp - H)))
        b2 = jnp.pad(b2, ((0, 0), (0, Hp - H)))
    if Tp != T:
        x = jnp.pad(x, ((0, 0), (0, Tp - T), (0, 0)))

    x_item = jnp.dtype(x.dtype).itemsize
    w_item = jnp.dtype(wt.dtype).itemsize
    single_buffer_params = hasattr(pl, "Buffered")
    w_copies = 1 if single_buffer_params else 2
    w_bytes = w_copies * (Hp * Hp + Hp) * w_item

    # Generation-aware VMEM budget (128 MiB physical on v5e/v6e, 64 MiB v7x).
    vmem_cap = _vmem_capacity_bytes()
    if vmem_cap >= (96 << 20):
        tile_budget, limit_cap, max_rows = 80 << 20, 96 << 20, 2048
    else:
        tile_budget, limit_cap, max_rows = 40 << 20, 48 << 20, 1024
    # TODO(synk): add a T-tiled path (second "arbitrary" grid axis + per-(b,h)
    # sum accumulator) for sequences where even block_b=1 exceeds the budget,
    # and an N-tiled weight path once 2*H^2 bytes exceeds ~25% of VMEM.

    bb = block_b if block_b is not None else _choose_block_b(
        B, Tp, Hp, x_item, w_bytes, tile_budget, max_rows)
    assert B % bb == 0, "block_b must divide the batch dimension"

    # Scoped-VMEM limit: always set explicitly (v5e's default is only 16 MiB),
    # with headroom for Mosaic internal scratch, capped below physical VMEM.
    need = (4 * bb * Tp * Hp * x_item            # x + out, double-buffered
            + 3 * bb * Tp * Hp * 4               # in-kernel f32 temporaries
            + w_bytes + (2 << 20))               # weight/bias + slack
    vmem_limit = int(min(limit_cap, max(32 << 20, need + need // 4)))

    def build(single_buffer):
        w_count = 1 if single_buffer else None
        return pl.pallas_call(
            attention_seq_kernel,
            out_shape=jax.ShapeDtypeStruct((B, Tp, Hp), out_dtype),
            grid_spec=pltpu.PrefetchScalarGridSpec(
                num_scalar_prefetch=0,
                grid=(B // bb,),
                in_specs=[
                    pl.BlockSpec((bb, Tp, Hp), lambda i: (i, 0, 0)),
                    # Grid-invariant weight/bias: single pipeline buffer.
                    _block_spec((Hp, Hp), lambda i: (0, 0), w_count),
                    _block_spec((1, Hp), lambda i: (0, 0), w_count),
                ],
                out_specs=pl.BlockSpec((bb, Tp, Hp), lambda i: (i, 0, 0)),
            ),
            compiler_params=pltpu.CompilerParams(
                dimension_semantics=("parallel",),
                vmem_limit_bytes=vmem_limit,
            ),
        )

    try:
        out = build(single_buffer_params)(x, wt, b2)
    except Exception:
        if not single_buffer_params:
            raise
        out = build(False)(x, wt, b2)    # fallback: default double-buffering

    if Hp != H or Tp != T:
        out = out[:, :T, :H]
    return out


def attention_seq_ref(features, weight, bias):
    # Pure-JAX reference mirroring the PyTorch forward (hard=0, mean=False).
    logits = jnp.tanh(jnp.einsum("bth,oh->bto", features, weight) + bias)
    mask = jnp.sign(jnp.sum(jnp.abs(features), axis=-1, keepdims=True))
    logits = jnp.where(mask == 1.0, logits, jnp.full_like(logits, NEG_FILL))
    attn = jax.nn.softmax(logits, axis=1)            # softmax over time
    return attn * features


if __name__ == "__main__":
    B, T, H = 8, 8, 32
    key = jax.random.PRNGKey(0)
    kx, kw, kb = jax.random.split(key, 3)

    features = jax.random.normal(kx, (B, T, H), dtype=jnp.float32)
    # Zero out one time step to exercise the masking path.
    features = features.at[:, 3, :].set(0.0)

    # Deterministic "Linear(hidden_dim, hidden_dim)" parameters.
    bound = 1.0 / np.sqrt(H)
    weight = jax.random.uniform(kw, (H, H), minval=-bound, maxval=bound,
                                dtype=jnp.float32)
    bias = jax.random.uniform(kb, (H,), minval=-bound, maxval=bound,
                              dtype=jnp.float32)

    out = attention_seq(features, weight, bias)
    out = jax.block_until_ready(out)

    ref = attention_seq_ref(features, weight, bias)
    np.testing.assert_allclose(np.asarray(out), np.asarray(ref),
                               rtol=1e-5, atol=1e-5)

    print("KERNEL_OK")
</pallas_src>

<mosaic_0001>
module attributes {stable_mosaic.version = 11 : i64} {
  func.func @attention_seq_kernel(%arg0: i32, %arg1: memref<2x8x128xf32, #tpu.memory_space<vmem>>, %arg2: memref<128x128xf32, #tpu.memory_space<vmem>>, %arg3: memref<1x128xf32, #tpu.memory_space<vmem>>, %arg4: memref<2x8x128xf32, #tpu.memory_space<vmem>>) attributes {dimension_semantics = [#tpu.dimension_semantics<parallel>], iteration_bounds = array<i64: 4>, scalar_prefetch = 0 : i64, scratch_operands = 0 : i64, tpu.core_type = #tpu.core_type<tc>, window_params = [{transform_indices = @transform_0, window_bounds = array<i64: 2, 8, 128>}, {pipeline_mode = #tpu.pipeline_mode<synchronous>, transform_indices = @transform_1, window_bounds = array<i64: 128, 128>}, {pipeline_mode = #tpu.pipeline_mode<synchronous>, transform_indices = @transform_2, window_bounds = array<i64: 1, 128>}, {transform_indices = @transform_3, window_bounds = array<i64: 2, 8, 128>}]} {
    %c0 = arith.constant 0 : index
    %c0_0 = arith.constant 0 : index
    %c0_1 = arith.constant 0 : index
    %0 = vector.load %arg1[%c0, %c0_0, %c0_1] : memref<2x8x128xf32, #tpu.memory_space<vmem>>, vector<2x8x128xf32>
    %c0_2 = arith.constant 0 : index
    %c0_3 = arith.constant 0 : index
    %1 = vector.load %arg2[%c0_2, %c0_3] : memref<128x128xf32, #tpu.memory_space<vmem>>, vector<128x128xf32>
    %c0_4 = arith.constant 0 : index
    %c0_5 = arith.constant 0 : index
    %2 = vector.load %arg3[%c0_4, %c0_5] : memref<1x128xf32, #tpu.memory_space<vmem>>, vector<1x128xf32>
    %3 = vector.shape_cast %0 : vector<2x8x128xf32> to vector<16x128xf32>
    %cst = arith.constant dense<0.000000e+00> : vector<16x128xf32>
    %4 = tpu.matmul %3, %1, %cst {dimension_numbers = #tpu.dot_dimension_numbers<[1], [0], [0], [1], [0, 0, 1, 1], [], []>} : vector<16x128xf32>, vector<128x128xf32>, vector<16x128xf32> -> vector<16x128xf32>
    %5 = vector.broadcast %2 : vector<1x128xf32> to vector<16x128xf32>
    %6 = arith.addf %4, %5 : vector<16x128xf32>
    %7 = math.tanh %6 : vector<16x128xf32>
    %8 = vector.shape_cast %7 : vector<16x128xf32> to vector<2x8x128xf32>
    %9 = math.absf %0 : vector<2x8x128xf32>
    %cst_6 = arith.constant dense<0.000000e+00> : vector<2x8xf32>
    %10 = vector.multi_reduction <add>, %9, %cst_6 [2] : vector<2x8x128xf32> to vector<2x8xf32>
    %11 = vector.shape_cast %10 : vector<2x8xf32> to vector<2x8x1xf32>
    %cst_7 = arith.constant 0.000000e+00 : f32
    %12 = vector.broadcast %cst_7 : f32 to vector<2x8x1xf32>
    %13 = arith.cmpf one, %11, %12 : vector<2x8x1xf32>
    %14 = math.exp %8 : vector<2x8x128xf32>
    %cst_8 = arith.constant 0.000000e+00 : f32
    %15 = vector.shape_cast %13 : vector<2x8x1xi1> to vector<2x8x1xi1>
    %16 = vector.broadcast %15 : vector<2x8x1xi1> to vector<2x8x128xi1>
    %17 = vector.broadcast %cst_8 : f32 to vector<2x8x128xf32>
    %18 = arith.select %16, %14, %17 : vector<2x8x128xi1>, vector<2x8x128xf32>
    %cst_9 = arith.constant dense<0.000000e+00> : vector<2x128xf32>
    %19 = vector.multi_reduction <add>, %18, %cst_9 [1] : vector<2x8x128xf32> to vector<2x128xf32>
    %20 = vector.shape_cast %19 : vector<2x128xf32> to vector<2x1x128xf32>
    %cst_10 = arith.constant 0.000000e+00 : f32
    %21 = vector.broadcast %cst_10 : f32 to vector<2x1x128xf32>
    %22 = arith.cmpf ogt, %20, %21 : vector<2x1x128xf32>
    %cst_11 = arith.constant 1.000000e+00 : f32
    %23 = vector.broadcast %cst_11 : f32 to vector<2x1x128xf32>
    %24 = arith.select %22, %20, %23 : vector<2x1x128xi1>, vector<2x1x128xf32>
    %25 = tpu.reciprocal %24 : vector<2x1x128xf32> -> vector<2x1x128xf32>
    %26 = vector.broadcast %25 : vector<2x1x128xf32> to vector<2x8x128xf32>
    %27 = arith.mulf %18, %26 : vector<2x8x128xf32>
    %28 = arith.mulf %27, %0 : vector<2x8x128xf32>
    %c0_12 = arith.constant 0 : index
    %c0_13 = arith.constant 0 : index
    %c0_14 = arith.constant 0 : index
    %29 = vector.load %arg4[%c0_12, %c0_13, %c0_14] : memref<2x8x128xf32, #tpu.memory_space<vmem>>, vector<2x8x128xf32>
    tpu.vector_store %arg4[%c0_12, %c0_13, %c0_14], %28 {strides = array<i32>} : memref<2x8x128xf32, #tpu.memory_space<vmem>>, vector<2x8x128xf32>,
    return
  }
  func.func @transform_0(%arg0: i32) -> (i32, i32, i32) {
    %c0_i32 = arith.constant 0 : i32
    %c0_i32_0 = arith.constant 0 : i32
    %c0_i32_1 = arith.constant 0 : i32
    return %arg0, %c0_i32, %c0_i32_0 : i32, i32, i32
  }
  func.func @transform_1(%arg0: i32) -> (i32, i32) {
    %c0_i32 = arith.constant 0 : i32
    %c0_i32_0 = arith.constant 0 : i32
    %c0_i32_1 = arith.constant 0 : i32
    return %c0_i32, %c0_i32_0 : i32, i32
  }
  func.func @transform_2(%arg0: i32) -> (i32, i32) {
    %c0_i32 = arith.constant 0 : i32
    %c0_i32_0 = arith.constant 0 : i32
    %c0_i32_1 = arith.constant 0 : i32
    return %c0_i32, %c0_i32_0 : i32, i32
  }
  func.func @transform_3(%arg0: i32) -> (i32, i32, i32) {
    %c0_i32 = arith.constant 0 : i32
    %c0_i32_0 = arith.constant 0 : i32
    %c0_i32_1 = arith.constant 0 : i32
    return %arg0, %c0_i32, %c0_i32_0 : i32, i32, i32
  }
}

module attributes {stable_mosaic.version = 11 : i64} {
  func.func @attention_seq_kernel(%arg0: i32, %arg1: memref<2x8x128xf32, #tpu.memory_space<vmem>>, %arg2: memref<128x128xf32, #tpu.memory_space<vmem>>, %arg3: memref<1x128xf32, #tpu.memory_space<vmem>>, %arg4: memref<2x8x128xf32, #tpu.memory_space<vmem>>) attributes {dimension_semantics = [#tpu.dimension_semantics<parallel>], iteration_bounds = array<i64: 4>, scalar_prefetch = 0 : i64, scratch_operands = 0 : i64, tpu.core_type = #tpu.core_type<tc>, window_params = [{transform_indices = @transform_0, window_bounds = array<i64: 2, 8, 128>}, {pipeline_mode = #tpu.pipeline_mode<synchronous>, transform_indices = @transform_1, window_bounds = array<i64: 128, 128>}, {pipeline_mode = #tpu.pipeline_mode<synchronous>, transform_indices = @transform_2, window_bounds = array<i64: 1, 128>}, {transform_indices = @transform_3, window_bounds = array<i64: 2, 8, 128>}]} {
    %c0 = arith.constant 0 : index
    %c0_0 = arith.constant 0 : index
    %c0_1 = arith.constant 0 : index
    %0 = vector.load %arg1[%c0, %c0_0, %c0_1] : memref<2x8x128xf32, #tpu.memory_space<vmem>>, vector<2x8x128xf32>
    %c0_2 = arith.constant 0 : index
    %c0_3 = arith.constant 0 : index
    %1 = vector.load %arg2[%c0_2, %c0_3] : memref<128x128xf32, #tpu.memory_space<vmem>>, vector<128x128xf32>
    %c0_4 = arith.constant 0 : index
    %c0_5 = arith.constant 0 : index
    %2 = vector.load %arg3[%c0_4, %c0_5] : memref<1x128xf32, #tpu.memory_space<vmem>>, vector<1x128xf32>
    %3 = vector.shape_cast %0 : vector<2x8x128xf32> to vector<16x128xf32>
    %cst = arith.constant dense<0.000000e+00> : vector<16x128xf32>
    %4 = tpu.matmul %3, %1, %cst {dimension_numbers = #tpu.dot_dimension_numbers<[1], [0], [0], [1], [0, 0, 1, 1], [], []>} : vector<16x128xf32>, vector<128x128xf32>, vector<16x128xf32> -> vector<16x128xf32>
    %5 = vector.broadcast %2 : vector<1x128xf32> to vector<16x128xf32>
    %6 = arith.addf %4, %5 : vector<16x128xf32>
    %7 = math.tanh %6 : vector<16x128xf32>
    %8 = vector.shape_cast %7 : vector<16x128xf32> to vector<2x8x128xf32>
    %9 = math.absf %0 : vector<2x8x128xf32>
    %cst_6 = arith.constant dense<0.000000e+00> : vector<2x8xf32>
    %10 = vector.multi_reduction <add>, %9, %cst_6 [2] : vector<2x8x128xf32> to vector<2x8xf32>
    %11 = vector.shape_cast %10 : vector<2x8xf32> to vector<2x8x1xf32>
    %cst_7 = arith.constant 0.000000e+00 : f32
    %12 = vector.broadcast %cst_7 : f32 to vector<2x8x1xf32>
    %13 = arith.cmpf one, %11, %12 : vector<2x8x1xf32>
    %14 = math.exp %8 : vector<2x8x128xf32>
    %cst_8 = arith.constant 0.000000e+00 : f32
    %15 = vector.shape_cast %13 : vector<2x8x1xi1> to vector<2x8x1xi1>
    %16 = vector.broadcast %15 : vector<2x8x1xi1> to vector<2x8x128xi1>
    %17 = vector.broadcast %cst_8 : f32 to vector<2x8x128xf32>
    %18 = arith.select %16, %14, %17 : vector<2x8x128xi1>, vector<2x8x128xf32>
    %cst_9 = arith.constant dense<0.000000e+00> : vector<2x128xf32>
    %19 = vector.multi_reduction <add>, %18, %cst_9 [1] : vector<2x8x128xf32> to vector<2x128xf32>
    %20 = vector.shape_cast %19 : vector<2x128xf32> to vector<2x1x128xf32>
    %cst_10 = arith.constant 0.000000e+00 : f32
    %21 = vector.broadcast %cst_10 : f32 to vector<2x1x128xf32>
    %22 = arith.cmpf ogt, %20, %21 : vector<2x1x128xf32>
    %cst_11 = arith.constant 1.000000e+00 : f32
    %23 = vector.broadcast %cst_11 : f32 to vector<2x1x128xf32>
    %24 = arith.select %22, %20, %23 : vector<2x1x128xi1>, vector<2x1x128xf32>
    %25 = tpu.reciprocal %24 : vector<2x1x128xf32> -> vector<2x1x128xf32>
    %26 = vector.broadcast %25 : vector<2x1x128xf32> to vector<2x8x128xf32>
    %27 = arith.mulf %18, %26 : vector<2x8x128xf32>
    %28 = arith.mulf %27, %0 : vector<2x8x128xf32>
    %c0_12 = arith.constant 0 : index
    %c0_13 = arith.constant 0 : index
    %c0_14 = arith.constant 0 : index
    %29 = vector.load %arg4[%c0_12, %c0_13, %c0_14] : memref<2x8x128xf32, #tpu.memory_space<vmem>>, vector<2x8x128xf32>
    tpu.vector_store %arg4[%c0_12, %c0_13, %c0_14], %28 {strides = array<i32>} : memref<2x8x128xf32, #tpu.memory_space<vmem>>, vector<2x8x128xf32>,
    return
  }
  func.func @transform_0(%arg0: i32) -> (i32, i32, i32) {
    %c0_i32 = arith.constant 0 : i32
    %c0_i32_0 = arith.constant 0 : i32
    %c0_i32_1 = arith.constant 0 : i32
    return %arg0, %c0_i32, %c0_i32_0 : i32, i32, i32
  }
  func.func @transform_1(%arg0: i32) -> (i32, i32) {
    %c0_i32 = arith.constant 0 : i32
    %c0_i32_0 = arith.constant 0 : i32
    %c0_i32_1 = arith.constant 0 : i32
    return %c0_i32, %c0_i32_0 : i32, i32
  }
  func.func @transform_2(%arg0: i32) -> (i32, i32) {
    %c0_i32 = arith.constant 0 : i32
    %c0_i32_0 = arith.constant 0 : i32
    %c0_i32_1 = arith.constant 0 : i32
    return %c0_i32, %c0_i32_0 : i32, i32
  }
  func.func @transform_3(%arg0: i32) -> (i32, i32, i32) {
    %c0_i32 = arith.constant 0 : i32
    %c0_i32_0 = arith.constant 0 : i32
    %c0_i32_1 = arith.constant 0 : i32
    return %arg0, %c0_i32, %c0_i32_0 : i32, i32, i32
  }
}

</mosaic_0001>

<llo_original>
// kernel: tpu_custom_call.1
$region0: #{tpu_custom_call.1}
  #allocation0 [shape = 'u32[]', space=smem, size = 0x4, offset = 0x4, fixed_abs, tag = 'smem constant byte address 0x4 - core index']
  #allocation1 [shape = 'u32[144,128]{1,0:T(1,128)}', space=vmem, size = 0x12000, scoped, tag = 'internal scratch']
  %s0 = inlined_call_operand.hbm [shape: f32[8,8,128], index: 0, kind: input, shape index: {}]
  %s1 = inlined_call_operand.hbm [shape: f32[128,128], index: 1, kind: input, shape index: {}]
  %s2 = inlined_call_operand.vmem [shape: f32[1,128], index: 2, kind: input, shape index: {}]
  %s3 = inlined_call_operand.hbm [shape: f32[8,8,128], index: 3, kind: output, shape index: {}]
  %s4 = sld [smem:[#allocation0]]
  $region53: #{tpu_custom_call.1} parent=0
    _
  %s6 = ssub.s32 1, %s4
  %s7 = scalar_select 0, %s6, %s4
  $region1: #{tpu_custom_call.1} parent=0
    #allocation2 [shape = 'u8[16384]{0}', space=vmem, size = 0x4000, scoped, tag = 'input window, operand 0']
    #allocation3 [shape = 's32[2]{0}', space=sflag, size = 0x8, scoped, tag = 'scoped memory for tpu_custom_call.1']
    #allocation4 [shape = 's32[2]{0}', space=sflag, size = 0x8, scoped, tag = 'scoped memory for tpu_custom_call.1']
    #allocation5 [shape = 'u8[65536]{0}', space=vmem, size = 0x10000, scoped, tag = 'input window, operand 1, single buffered']
    #allocation6 [shape = 's32[1]{0}', space=sflag, size = 0x4, scoped, tag = 'scoped memory for tpu_custom_call.1']
    #allocation7 [shape = 'u8[16384]{0}', space=vmem, size = 0x4000, scoped, tag = 'output window, operand 0']
    %8 = vsyncpa [#allocation3], 0
    %s9 = scalar_lea.sflag [#allocation3], 1
    %10 = vsyncpa %s9, 0
    %11 = vsyncpa [#allocation6], 0
    %12 = vsyncpa [#allocation4], 0
    %s13 = scalar_lea.sflag [#allocation4], 1
    %14 = vsyncpa %s13, 0
    loop: start=0, step=1, limit=6
    $region2: #{tpu_custom_call.1} parent=1 // loop_pre_header
      _
    $region3: #{tpu_custom_call.1} parent=1 // loop_header
      %s16 = sphi 0, %s20
      %p17 = scmp.ge.s32.totalorder %s16, 6
      %s26 = sphi 0, %s28
      %s29 = sphi 0, %s26
      %s30 = sphi 0, %s29
      %s46 = sphi 0, %s30
      %s50 = sphi 0, %s50
      %s52 = sphi 0, %s50
      %s53 = sphi 0, %s52
      %s67 = sphi 0, %s53
      %s71 = sphi 0, %s71
      %s73 = sphi 0, %s71
      %s74 = sphi 0, %s73
      %s88 = sphi 0, %s74
      %s94 = sphi 0, %s96
      %s97 = sphi 0, %s94
      %s98 = sphi 0, %s97
      %s114 = sphi 0, %s98
    $region4: #{tpu_custom_call.1} parent=1 // loop_header_branch
      %19 = sbr.rel (%p17) target = $region8
    $region5: #{tpu_custom_call.1} parent=1 // loop_body
      %s21 = ssub.s32 %s16, 1
      %s22 = ssub.s32 %s16, 2
      %s23 = sadd.s32 %s16, 1
      %s24 = ssub.s32 %s16, %s23
      %p25 = scmp.eq.s32.totalorder %s24, 0
      %s27 = sadd.s32 %s26, 1
      %s28 = scalar_select %p25, %s26, %s27
      %p31 = pneg %p25
      %p32 = scmp.eq.s32.totalorder %s16, 3
      %p33 = por %p31, %p32
      %p34 = scmp.ne.s32.totalorder %s26, %s29
      %p35 = scmp.eq.s32.totalorder %s16, 0
      %p36 = por %p34, %p35
      %p37 = scmp.ne.s32.totalorder %s26, %s29
      %p38 = scmp.eq.s32.totalorder %s21, 3
      %p39 = por %p37, %p38
      %p40 = scmp.ne.s32.totalorder %s29, %s30
      %p41 = scmp.eq.s32.totalorder %s21, 0
      %p42 = por %p40, %p41
      %p43 = scmp.ne.s32.totalorder %s29, %s30
      %p44 = scmp.eq.s32.totalorder %s22, 3
      %p45 = por %p43, %p44
      %p47 = scmp.ne.s32.totalorder %s30, %s46
      %p48 = scmp.eq.s32.totalorder %s22, 0
      %p49 = por %p47, %p48
      %s51 = sadd.s32 %s50, 1
      %p54 = scmp.eq.s32.totalorder %s16, 3
      %p55 = scmp.ne.s32.totalorder %s50, %s52
      %p56 = scmp.eq.s32.totalorder %s16, 0
      %p57 = por %p55, %p56
      %p58 = scmp.ne.s32.totalorder %s50, %s52
      %p59 = scmp.eq.s32.totalorder %s21, 3
      %p60 = por %p58, %p59
      %p61 = scmp.ne.s32.totalorder %s52, %s53
      %p62 = scmp.eq.s32.totalorder %s21, 0
      %p63 = por %p61, %p62
      %p64 = scmp.ne.s32.totalorder %s52, %s53
      %p65 = scmp.eq.s32.totalorder %s22, 3
      %p66 = por %p64, %p65
      %p68 = scmp.ne.s32.totalorder %s53, %s67
      %p69 = scmp.eq.s32.totalorder %s22, 0
      %p70 = por %p68, %p69
      %s72 = sadd.s32 %s71, 1
      %p75 = scmp.eq.s32.totalorder %s16, 3
      %p76 = scmp.ne.s32.totalorder %s71, %s73
      %p77 = scmp.eq.s32.totalorder %s16, 0
      %p78 = por %p76, %p77
      %p79 = scmp.ne.s32.totalorder %s71, %s73
      %p80 = scmp.eq.s32.totalorder %s21, 3
      %p81 = por %p79, %p80
      %p82 = scmp.ne.s32.totalorder %s73, %s74
      %p83 = scmp.eq.s32.totalorder %s21, 0
      %p84 = por %p82, %p83
      %p85 = scmp.ne.s32.totalorder %s73, %s74
      %p86 = scmp.eq.s32.totalorder %s22, 3
      %p87 = por %p85, %p86
      %p89 = scmp.ne.s32.totalorder %s74, %s88
      %p90 = scmp.eq.s32.totalorder %s22, 0
      %p91 = por %p89, %p90
      %s92 = ssub.s32 %s16, %s23
      %p93 = scmp.eq.s32.totalorder %s92, 0
      %s95 = sadd.s32 %s94, 1
      %s96 = scalar_select %p93, %s94, %s95
      %p99 = pneg %p93
      %p100 = scmp.eq.s32.totalorder %s16, 3
      %p101 = por %p99, %p100
      %p102 = scmp.ne.s32.totalorder %s94, %s97
      %p103 = scmp.eq.s32.totalorder %s16, 0
      %p104 = por %p102, %p103
      %p105 = scmp.ne.s32.totalorder %s94, %s97
      %p106 = scmp.eq.s32.totalorder %s21, 3
      %p107 = por %p105, %p106
      %p108 = scmp.ne.s32.totalorder %s97, %s98
      %p109 = scmp.eq.s32.totalorder %s21, 0
      %p110 = por %p108, %p109
      %p111 = scmp.ne.s32.totalorder %s97, %s98
      %p112 = scmp.eq.s32.totalorder %s22, 3
      %p113 = por %p111, %p112
      %p115 = scmp.ne.s32.totalorder %s98, %s114
      %p116 = scmp.eq.s32.totalorder %s22, 0
      %p117 = por %p115, %p116
      %p118 = scmp.le.s32.totalorder 1, %s16
      %p119 = scmp.lt.s32.totalorder %s16, 5
      %p120 = pnand %p118, %p119
      %p121 = pneg %p120
      // Predicated region
      $region9: #{tpu_custom_call.1} parent=5 // pred_check
        _
      $region10: #{tpu_custom_call.1} parent=5 // pred_check_branch
        %123 = sbr.rel (%p120) target = $region12
      $region11: #{tpu_custom_call.1} parent=5 // pred_region
        %s124 = ssub.s32 %s16, 1
        // Predicated region
        $region13: #{tpu_custom_call.1} parent=11 // pred_check
          %p125 = pneg %p63
        $region14: #{tpu_custom_call.1} parent=11 // pred_check_branch
          %127 = sbr.rel (%p125) target = $region16
        $region15: #{tpu_custom_call.1} parent=11 // pred_region
          %s129 = ssub.s32 2048, 2048
          %130 = vsyncadd [#allocation6], %s129
          %s131 = sshll.u32 [#allocation5], 4
          %s132 = int_to_ptr.vmem [resolvable:$true] %s131
          %137 = dma.hbm_to_vmem [thread:$0]  %s1, 2048, %s132, [#allocation6], 128, 128, 8
        $region16: #{tpu_custom_call.1} parent=11 // pred_fallthru
          _
        // Predicated region
        $region17: #{tpu_custom_call.1} parent=11 // pred_check
          %p138 = pneg %p84
        $region18: #{tpu_custom_call.1} parent=11 // pred_check_branch
          %140 = sbr.rel (%p138) target = $region20
        $region19: #{tpu_custom_call.1} parent=11 // pred_region
          _
        $region20: #{tpu_custom_call.1} parent=11 // pred_fallthru
          _
      $region12: #{tpu_custom_call.1} parent=5 // pred_fallthru
        _
      %p141 = scmp.lt.s32.totalorder %s16, 4
      // Predicated region
      $region21: #{tpu_custom_call.1} parent=5 // pred_check
        %p142 = pneg %p141
      $region22: #{tpu_custom_call.1} parent=5 // pred_check_branch
        %144 = sbr.rel (%p142) target = $region24
      $region23: #{tpu_custom_call.1} parent=5 // pred_region
        // Predicated region
        $region25: #{tpu_custom_call.1} parent=23 // pred_check
          %p145 = pneg %p36
        $region26: #{tpu_custom_call.1} parent=23 // pred_check_branch
          %147 = sbr.rel (%p145) target = $region28
        $region27: #{tpu_custom_call.1} parent=23 // pred_region
          %s148 = sand.u32 %s26, 1
          %s149 = scalar_lea.sflag [#allocation3], %s148
          %s150 = sand.u32 %s26, 1
          %s151 = smul.addr %s150, 16
          %s152 = scalar_lea.vmem [#allocation2], %s151
          %s153 = smul.u32 2, %s16
          %s155 = ssub.s32 256, 256
          %156 = vsyncadd %s149, %s155
          %s157 = smul.addr %s153, 128
          %s158 = scalar_lea.hbm %s0, %s157
          %s159 = sshll.u32 %s152, 4
          %s160 = int_to_ptr.vmem [resolvable:$true] %s159
          %165 = dma.hbm_to_vmem [thread:$0]  %s158, 256, %s160, %s149, 128, 128, 8
        $region28: #{tpu_custom_call.1} parent=23 // pred_fallthru
          _
      $region24: #{tpu_custom_call.1} parent=5 // pred_fallthru
        _
      %p166 = scmp.le.s32.totalorder 1, %s16
      %p167 = scmp.lt.s32.totalorder %s16, 5
      %p168 = pnand %p166, %p167
      %p169 = pneg %p168
      // Predicated region
      $region29: #{tpu_custom_call.1} parent=5 // pred_check
        _
      $region30: #{tpu_custom_call.1} parent=5 // pred_check_branch
        %171 = sbr.rel (%p168) target = $region32
      $region31: #{tpu_custom_call.1} parent=5 // pred_region
        %s172 = ssub.s32 %s16, 1
        %s173 = sand.u32 %s29, 1
        %s174 = scalar_lea.sflag [#allocation3], %s173
        %s175 = sand.u32 %s29, 1
        %s176 = smul.addr %s175, 16
        %s177 = scalar_lea.vmem [#allocation2], %s176
        // Predicated region
        $region33: #{tpu_custom_call.1} parent=31 // pred_check
          %p178 = pneg %p42
        $region34: #{tpu_custom_call.1} parent=31 // pred_check_branch
          %180 = sbr.rel (%p178) target = $region36
        $region35: #{tpu_custom_call.1} parent=31 // pred_region
          %181 = dma.done %s174, 256
        $region36: #{tpu_custom_call.1} parent=31 // pred_fallthru
          _
        // Predicated region
        $region37: #{tpu_custom_call.1} parent=31 // pred_check
          %p182 = pneg %p63
        $region38: #{tpu_custom_call.1} parent=31 // pred_check_branch
          %184 = sbr.rel (%p182) target = $region40
        $region39: #{tpu_custom_call.1} parent=31 // pred_region
          %185 = dma.done [#allocation6], 2048
        $region40: #{tpu_custom_call.1} parent=31 // pred_fallthru
          _
        %s186 = sand.u32 %s29, 1
        %s187 = scalar_lea.sflag [#allocation3], %s186
        %s188 = sand.u32 %s29, 1
        %s189 = smul.addr %s188, 16
        %s190 = scalar_lea.vmem [#allocation2], %s189
        %p191 = pneg %p42
        %p192 = pneg %p39
        %p193 = pneg %p63
        %p194 = pneg %p60
        %p195 = pneg %p84
        %p196 = pneg %p81
        %p197 = pneg %p110
        %p198 = pneg %p107
        %s199 = sand.u32 %s97, 1
        %s200 = scalar_lea.sflag [#allocation4], %s199
        %s201 = sand.u32 %s97, 1
        %s202 = smul.addr %s201, 16
        %s203 = scalar_lea.vmem [#allocation7], %s202
        %s204 = smul.u32 2, %s21
        %s205 = smul.u32 2, %s21
        %v206 = vld [vmem:[%s177] sm:$0xff]
        %v207 = vld [vmem:[%s177 + $0x8] sm:$0xff]
        %v208 = vld [vmem:[#allocation5] sm:$0xff]
        %v209 = vld [vmem:[#allocation5 + $0x8] sm:$0xff]
        %v210 = vld [vmem:[#allocation5 + $0x10] sm:$0xff]
        %v211 = vld [vmem:[#allocation5 + $0x18] sm:$0xff]
        %v212 = vld [vmem:[#allocation5 + $0x20] sm:$0xff]
        %v213 = vld [vmem:[#allocation5 + $0x28] sm:$0xff]
        %v214 = vld [vmem:[#allocation5 + $0x30] sm:$0xff]
        %v215 = vld [vmem:[#allocation5 + $0x38] sm:$0xff]
        %v216 = vld [vmem:[#allocation5 + $0x40] sm:$0xff]
        %v217 = vld [vmem:[#allocation5 + $0x48] sm:$0xff]
        %v218 = vld [vmem:[#allocation5 + $0x50] sm:$0xff]
        %v219 = vld [vmem:[#allocation5 + $0x58] sm:$0xff]
        %v220 = vld [vmem:[#allocation5 + $0x60] sm:$0xff]
        %v221 = vld [vmem:[#allocation5 + $0x68] sm:$0xff]
        %v222 = vld [vmem:[#allocation5 + $0x70] sm:$0xff]
        %v223 = vld [vmem:[#allocation5 + $0x78] sm:$0xff]
        %v224 = vld [vmem:[%s2] sm:$0x1]
        %v226 = vlaneseq
        %v227 = vshrl.u32 %v226, 7
        %v228 = vsub.s32 0, %v227
        %v229 = vrot.slane %v224, %v228
        %231 = vmatprep.subr.mxu0 0.0
        %232 = vmatpush1.msra.mxu0 %v223
        %233 = vmatprep.subr.mxu0 0.0
        %234 = vmatpush1.msra.mxu0 %v222
        %235 = vmatprep.subr.mxu0 0.0
        %236 = vmatpush1.msra.mxu0 %v221
        %237 = vmatprep.subr.mxu0 0.0
        %238 = vmatpush1.msra.mxu0 %v220
        %239 = vmatprep.subr.mxu0 0.0
        %240 = vmatpush1.msra.mxu0 %v219
        %241 = vmatprep.subr.mxu0 0.0
        %242 = vmatpush1.msra.mxu0 %v218
        %243 = vmatprep.subr.mxu0 0.0
        %244 = vmatpush1.msra.mxu0 %v217
        %245 = vmatprep.subr.mxu0 0.0
        %246 = vmatpush1.msra.mxu0 %v216
        %247 = vmatprep.subr.mxu0 0.0
        %248 = vmatpush1.msra.mxu0 %v215
        %249 = vmatprep.subr.mxu0 0.0
        %250 = vmatpush1.msra.mxu0 %v214
        %251 = vmatprep.subr.mxu0 0.0
        %252 = vmatpush1.msra.mxu0 %v213
        %253 = vmatprep.subr.mxu0 0.0
        %254 = vmatpush1.msra.mxu0 %v212
        %255 = vmatprep.subr.mxu0 0.0
        %256 = vmatpush1.msra.mxu0 %v211
        %257 = vmatprep.subr.mxu0 0.0
        %258 = vmatpush1.msra.mxu0 %v210
        %259 = vmatprep.subr.mxu0 0.0
        %260 = vmatpush1.msra.mxu0 %v209
        %261 = vmatprep.subr.mxu0 0.0
        %262 = vmatpush1.msra.mxu0 %v208
        %263 = vmatprep.subr.mxu0 0.0
        %264 = vmatpush2.msra.mxu0 0.0
        %265 = vmatprep.subr.mxu0 0.0
        %266 = vmatpush2.msra.mxu0 0.0
        %267 = vmatprep.subr.mxu0 0.0
        %268 = vmatpush2.msra.mxu0 0.0
        %269 = vmatprep.subr.mxu0 0.0
        %270 = vmatpush2.msra.mxu0 0.0
        %271 = vmatprep.subr.mxu0 0.0
        %272 = vmatpush2.msra.mxu0 0.0
        %273 = vmatprep.subr.mxu0 0.0
        %274 = vmatpush2.msra.mxu0 0.0
        %275 = vmatprep.subr.mxu0 0.0
        %276 = vmatpush2.msra.mxu0 0.0
        %277 = vmatprep.subr.mxu0 0.0
        %278 = vmatpush2.msra.mxu0 0.0
        %279 = vmatprep.subr.mxu0 0.0
        %280 = vmatpush2.msra.mxu0 0.0
        %281 = vmatprep.subr.mxu0 0.0
        %282 = vmatpush2.msra.mxu0 0.0
        %283 = vmatprep.subr.mxu0 0.0
        %284 = vmatpush2.msra.mxu0 0.0
        %285 = vmatprep.subr.mxu0 0.0
        %286 = vmatpush2.msra.mxu0 0.0
        %287 = vmatprep.subr.mxu0 0.0
        %288 = vmatpush2.msra.mxu0 0.0
        %289 = vmatprep.subr.mxu0 0.0
        %290 = vmatpush2.msra.mxu0 0.0
        %291 = vmatprep.subr.mxu0 0.0
        %292 = vmatpush2.msra.mxu0 0.0
        %293 = vmatprep.subr.mxu0 0.0
        %294 = vmatpush2.msra.mxu0 0.0
        %295 = vmatprep.mubr.f32.mxu0 0.0
        %296 = vmatmul.mubr.f32.gmra.mxu0 %v206
        %v297 = vpop.f32.mrf.mxu0
        %v298 = vadd.f32 %v229, %v297
        %v299 = vpop.f32.mrf.mxu0
        %300 = vmatprep.mubr.f32.mxu0 0.0
        %301 = vmatmul.mubr.f32.gmra.mxu0 %v207
        %v302 = vpop.f32.mrf.mxu0
        %v303 = vadd.f32 %v229, %v302
        %v304 = vpop.f32.mrf.mxu0
        %305 = vdwg.mxu0
        %v306 = vtanh.pop %v298
        %v307 = vtanh.pop %v303
        %v308 = vand.u32 2147483647, %v206
        %v309 = vand.u32 2147483647, %v207
        %310 = vadd.xlane.f32.xlu0 %v308
        %v311 = vpop.xlane.xlu0 %310
        %312 = vadd.xlane.f32.xlu0 %v309
        %v313 = vpop.xlane.xlu0 %312
        %vm314 = vcmp.ne.f32.partialorder %v311, 0.0
        %vm315 = vcmp.ne.f32.partialorder %v313, 0.0
        %v316 = vmul.f32 %v306, 1.442695
        %v317 = vpow.pop %v316
        %v318 = vmul.f32 %v307, 1.442695
        %v319 = vpow.pop %v318
        %v320 = vsel %vm314, 1, 0
        %v321 = vsel %vm315, 1, 0
        %vm322 = vcmp.eq.s32.totalorder %v320, 1
        %vm323 = vcmp.eq.s32.totalorder %v321, 1
        %v324 = vsel %vm322, %v317, 0.0
        %v325 = vsel %vm323, %v319, 0.0
        %v326 = vrot.slane %v324, 4
        %v327 = vadd.f32 %v324, %v326
        %v328 = vrot.slane %v327, 2
        %v329 = vadd.f32 %v327, %v328
        %v330 = vrot.slane %v329, 1
        %v331 = vadd.f32 %v329, %v330
        %v332 = vrot.slane %v325, 4
        %v333 = vadd.f32 %v325, %v332
        %v334 = vrot.slane %v333, 2
        %v335 = vadd.f32 %v333, %v334
        %v336 = vrot.slane %v335, 1
        %v337 = vadd.f32 %v335, %v336
        %vm338 = vcmp.gt.f32.partialorder %v331, 0.0
        %vm339 = vcmp.gt.f32.partialorder %v337, 0.0
        %v340 = vsel %vm338, %v331, 1.0
        %v341 = vsel %vm339, %v337, 1.0
        %v342 = vrcp.pop %v340
        %v343 = vrcp.pop %v341
        %v344 = vmul.f32 %v324, %v342
        %v345 = vmul.f32 %v325, %v343
        %v346 = vmul.f32 %v344, %v206
        %v347 = vmul.f32 %v345, %v207
        %348 = vst [vmem:[%s203] sm:$0xff] %v346
        %349 = vst [vmem:[%s203 + $0x8] sm:$0xff] %v347
        %s350 = sand.u32 %s97, 1
        %s351 = scalar_lea.sflag [#allocation4], %s350
        %s352 = sand.u32 %s97, 1
        %s353 = smul.addr %s352, 16
        %s354 = scalar_lea.vmem [#allocation7], %s353
        // Predicated region
        $region41: #{tpu_custom_call.1} parent=31 // pred_check
          %p355 = pneg %p107
        $region42: #{tpu_custom_call.1} parent=31 // pred_check_branch
          %357 = sbr.rel (%p355) target = $region44
        $region43: #{tpu_custom_call.1} parent=31 // pred_region
          %s358 = smul.u32 2, %s21
          %s360 = ssub.s32 256, 256
          %361 = vsyncadd %s351, %s360
          %s362 = smul.addr %s358, 128
          %s363 = scalar_lea.hbm %s3, %s362
          %s364 = sshll.u32 %s354, 4
          %s365 = int_to_ptr.vmem [resolvable:$true] %s364
          %370 = dma.vmem_to_hbm [thread:$0]  %s365, 256, %s363, %s351, 128, 128, 8
        $region44: #{tpu_custom_call.1} parent=31 // pred_fallthru
          _
      $region32: #{tpu_custom_call.1} parent=5 // pred_fallthru
        _
      %p371 = scmp.le.s32.totalorder 2, %s16
      // Predicated region
      $region45: #{tpu_custom_call.1} parent=5 // pred_check
        %p372 = pneg %p371
      $region46: #{tpu_custom_call.1} parent=5 // pred_check_branch
        %374 = sbr.rel (%p372) target = $region48
      $region47: #{tpu_custom_call.1} parent=5 // pred_region
        %s375 = ssub.s32 %s16, 2
        // Predicated region
        $region49: #{tpu_custom_call.1} parent=47 // pred_check
          %p376 = pneg %p113
        $region50: #{tpu_custom_call.1} parent=47 // pred_check_branch
          %378 = sbr.rel (%p376) target = $region52
        $region51: #{tpu_custom_call.1} parent=47 // pred_region
          %s379 = sand.u32 %s98, 1
          %s380 = scalar_lea.sflag [#allocation4], %s379
          %s381 = sand.u32 %s98, 1
          %s382 = smul.addr %s381, 16
          %s383 = scalar_lea.vmem [#allocation7], %s382
          %384 = dma.done %s380, 256
        $region52: #{tpu_custom_call.1} parent=47 // pred_fallthru
          _
      $region48: #{tpu_custom_call.1} parent=5 // pred_fallthru
        _
    $region6: #{tpu_custom_call.1} parent=1 // loop_footer
      %s20 = sadd.s32 1, %s16
    $region7: #{tpu_custom_call.1} parent=1 // loop_footer_branch
      %15 = sbr.rel target = $region3
    $region8: #{tpu_custom_call.1} parent=1 // loop_exit
      _
    %385 = vsyncpa [#allocation3], 1
    %s386 = scalar_lea.sflag [#allocation3], 1
    %387 = vsyncpa %s386, 1
    %388 = vsyncpa [#allocation6], 1
    %389 = vsyncpa [#allocation4], 1
    %s390 = scalar_lea.sflag [#allocation4], 1
    %391 = vsyncpa %s390, 1

// kernel: tpu_custom_call.1
$region0: #{tpu_custom_call.1}
  #allocation0 [shape = 'u32[]', space=smem, size = 0x4, offset = 0x4, fixed_abs, tag = 'smem constant byte address 0x4 - core index']
  #allocation1 [shape = 'u32[144,128]{1,0:T(1,128)}', space=vmem, size = 0x12000, scoped, tag = 'internal scratch']
  %s0 = inlined_call_operand.hbm [shape: f32[8,8,128], index: 0, kind: input, shape index: {}]
  %s1 = inlined_call_operand.hbm [shape: f32[128,128], index: 1, kind: input, shape index: {}]
  %s2 = inlined_call_operand.vmem [shape: f32[1,128], index: 2, kind: input, shape index: {}]
  %s3 = inlined_call_operand.hbm [shape: f32[8,8,128], index: 3, kind: output, shape index: {}]
  %s4 = sld [smem:[#allocation0]]
  $region53: #{tpu_custom_call.1} parent=0
    _
  %s6 = ssub.s32 1, %s4
  %s7 = scalar_select 0, %s6, %s4
  $region1: #{tpu_custom_call.1} parent=0
    #allocation2 [shape = 'u8[16384]{0}', space=vmem, size = 0x4000, scoped, tag = 'input window, operand 0']
    #allocation3 [shape = 's32[2]{0}', space=sflag, size = 0x8, scoped, tag = 'scoped memory for tpu_custom_call.1']
    #allocation4 [shape = 's32[2]{0}', space=sflag, size = 0x8, scoped, tag = 'scoped memory for tpu_custom_call.1']
    #allocation5 [shape = 'u8[65536]{0}', space=vmem, size = 0x10000, scoped, tag = 'input window, operand 1, single buffered']
    #allocation6 [shape = 's32[1]{0}', space=sflag, size = 0x4, scoped, tag = 'scoped memory for tpu_custom_call.1']
    #allocation7 [shape = 'u8[16384]{0}', space=vmem, size = 0x4000, scoped, tag = 'output window, operand 0']
    %8 = vsyncpa [#allocation3], 0
    %s9 = scalar_lea.sflag [#allocation3], 1
    %10 = vsyncpa %s9, 0
    %11 = vsyncpa [#allocation6], 0
    %12 = vsyncpa [#allocation4], 0
    %s13 = scalar_lea.sflag [#allocation4], 1
    %14 = vsyncpa %s13, 0
    loop: start=0, step=1, limit=6
    $region2: #{tpu_custom_call.1} parent=1 // loop_pre_header
      _
    $region3: #{tpu_custom_call.1} parent=1 // loop_header
      %s16 = sphi 0, %s20
      %p17 = scmp.ge.s32.totalorder %s16, 6
      %s26 = sphi 0, %s28
      %s29 = sphi 0, %s26
      %s30 = sphi 0, %s29
      %s46 = sphi 0, %s30
      %s50 = sphi 0, %s50
      %s52 = sphi 0, %s50
      %s53 = sphi 0, %s52
      %s67 = sphi 0, %s53
      %s71 = sphi 0, %s71
      %s73 = sphi 0, %s71
      %s74 = sphi 0, %s73
      %s88 = sphi 0, %s74
      %s94 = sphi 0, %s96
      %s97 = sphi 0, %s94
      %s98 = sphi 0, %s97
      %s114 = sphi 0, %s98
    $region4: #{tpu_custom_call.1} parent=1 // loop_header_branch
      %19 = sbr.rel (%p17) target = $region8
    $region5: #{tpu_custom_call.1} parent=1 // loop_body
      %s21 = ssub.s32 %s16, 1
      %s22 = ssub.s32 %s16, 2
      %s23 = sadd.s32 %s16, 1
      %s24 = ssub.s32 %s16, %s23
      %p25 = scmp.eq.s32.totalorder %s24, 0
      %s27 = sadd.s32 %s26, 1
      %s28 = scalar_select %p25, %s26, %s27
      %p31 = pneg %p25
      %p32 = scmp.eq.s32.totalorder %s16, 3
      %p33 = por %p31, %p32
      %p34 = scmp.ne.s32.totalorder %s26, %s29
      %p35 = scmp.eq.s32.totalorder %s16, 0
      %p36 = por %p34, %p35
      %p37 = scmp.ne.s32.totalorder %s26, %s29
      %p38 = scmp.eq.s32.totalorder %s21, 3
      %p39 = por %p37, %p38
      %p40 = scmp.ne.s32.totalorder %s29, %s30
      %p41 = scmp.eq.s32.totalorder %s21, 0
      %p42 = por %p40, %p41
      %p43 = scmp.ne.s32.totalorder %s29, %s30
      %p44 = scmp.eq.s32.totalorder %s22, 3
      %p45 = por %p43, %p44
      %p47 = scmp.ne.s32.totalorder %s30, %s46
      %p48 = scmp.eq.s32.totalorder %s22, 0
      %p49 = por %p47, %p48
      %s51 = sadd.s32 %s50, 1
      %p54 = scmp.eq.s32.totalorder %s16, 3
      %p55 = scmp.ne.s32.totalorder %s50, %s52
      %p56 = scmp.eq.s32.totalorder %s16, 0
      %p57 = por %p55, %p56
      %p58 = scmp.ne.s32.totalorder %s50, %s52
      %p59 = scmp.eq.s32.totalorder %s21, 3
      %p60 = por %p58, %p59
      %p61 = scmp.ne.s32.totalorder %s52, %s53
      %p62 = scmp.eq.s32.totalorder %s21, 0
      %p63 = por %p61, %p62
      %p64 = scmp.ne.s32.totalorder %s52, %s53
      %p65 = scmp.eq.s32.totalorder %s22, 3
      %p66 = por %p64, %p65
      %p68 = scmp.ne.s32.totalorder %s53, %s67
      %p69 = scmp.eq.s32.totalorder %s22, 0
      %p70 = por %p68, %p69
      %s72 = sadd.s32 %s71, 1
      %p75 = scmp.eq.s32.totalorder %s16, 3
      %p76 = scmp.ne.s32.totalorder %s71, %s73
      %p77 = scmp.eq.s32.totalorder %s16, 0
      %p78 = por %p76, %p77
      %p79 = scmp.ne.s32.totalorder %s71, %s73
      %p80 = scmp.eq.s32.totalorder %s21, 3
      %p81 = por %p79, %p80
      %p82 = scmp.ne.s32.totalorder %s73, %s74
      %p83 = scmp.eq.s32.totalorder %s21, 0
      %p84 = por %p82, %p83
      %p85 = scmp.ne.s32.totalorder %s73, %s74
      %p86 = scmp.eq.s32.totalorder %s22, 3
      %p87 = por %p85, %p86
      %p89 = scmp.ne.s32.totalorder %s74, %s88
      %p90 = scmp.eq.s32.totalorder %s22, 0
      %p91 = por %p89, %p90
      %s92 = ssub.s32 %s16, %s23
      %p93 = scmp.eq.s32.totalorder %s92, 0
      %s95 = sadd.s32 %s94, 1
      %s96 = scalar_select %p93, %s94, %s95
      %p99 = pneg %p93
      %p100 = scmp.eq.s32.totalorder %s16, 3
      %p101 = por %p99, %p100
      %p102 = scmp.ne.s32.totalorder %s94, %s97
      %p103 = scmp.eq.s32.totalorder %s16, 0
      %p104 = por %p102, %p103
      %p105 = scmp.ne.s32.totalorder %s94, %s97
      %p106 = scmp.eq.s32.totalorder %s21, 3
      %p107 = por %p105, %p106
      %p108 = scmp.ne.s32.totalorder %s97, %s98
      %p109 = scmp.eq.s32.totalorder %s21, 0
      %p110 = por %p108, %p109
      %p111 = scmp.ne.s32.totalorder %s97, %s98
      %p112 = scmp.eq.s32.totalorder %s22, 3
      %p113 = por %p111, %p112
      %p115 = scmp.ne.s32.totalorder %s98, %s114
      %p116 = scmp.eq.s32.totalorder %s22, 0
      %p117 = por %p115, %p116
      %p118 = scmp.le.s32.totalorder 1, %s16
      %p119 = scmp.lt.s32.totalorder %s16, 5
      %p120 = pnand %p118, %p119
      %p121 = pneg %p120
      // Predicated region
      $region9: #{tpu_custom_call.1} parent=5 // pred_check
        _
      $region10: #{tpu_custom_call.1} parent=5 // pred_check_branch
        %123 = sbr.rel (%p120) target = $region12
      $region11: #{tpu_custom_call.1} parent=5 // pred_region
        %s124 = ssub.s32 %s16, 1
        // Predicated region
        $region13: #{tpu_custom_call.1} parent=11 // pred_check
          %p125 = pneg %p63
        $region14: #{tpu_custom_call.1} parent=11 // pred_check_branch
          %127 = sbr.rel (%p125) target = $region16
        $region15: #{tpu_custom_call.1} parent=11 // pred_region
          %s129 = ssub.s32 2048, 2048
          %130 = vsyncadd [#allocation6], %s129
          %s131 = sshll.u32 [#allocation5], 4
          %s132 = int_to_ptr.vmem [resolvable:$true] %s131
          %137 = dma.hbm_to_vmem [thread:$0]  %s1, 2048, %s132, [#allocation6], 128, 128, 8
        $region16: #{tpu_custom_call.1} parent=11 // pred_fallthru
          _
        // Predicated region
        $region17: #{tpu_custom_call.1} parent=11 // pred_check
          %p138 = pneg %p84
        $region18: #{tpu_custom_call.1} parent=11 // pred_check_branch
          %140 = sbr.rel (%p138) target = $region20
        $region19: #{tpu_custom_call.1} parent=11 // pred_region
          _
        $region20: #{tpu_custom_call.1} parent=11 // pred_fallthru
          _
      $region12: #{tpu_custom_call.1} parent=5 // pred_fallthru
        _
      %p141 = scmp.lt.s32.totalorder %s16, 4
      // Predicated region
      $region21: #{tpu_custom_call.1} parent=5 // pred_check
        %p142 = pneg %p141
      $region22: #{tpu_custom_call.1} parent=5 // pred_check_branch
        %144 = sbr.rel (%p142) target = $region24
      $region23: #{tpu_custom_call.1} parent=5 // pred_region
        // Predicated region
        $region25: #{tpu_custom_call.1} parent=23 // pred_check
          %p145 = pneg %p36
        $region26: #{tpu_custom_call.1} parent=23 // pred_check_branch
          %147 = sbr.rel (%p145) target = $region28
        $region27: #{tpu_custom_call.1} parent=23 // pred_region
          %s148 = sand.u32 %s26, 1
          %s149 = scalar_lea.sflag [#allocation3], %s148
          %s150 = sand.u32 %s26, 1
          %s151 = smul.addr %s150, 16
          %s152 = scalar_lea.vmem [#allocation2], %s151
          %s153 = smul.u32 2, %s16
          %s155 = ssub.s32 256, 256
          %156 = vsyncadd %s149, %s155
          %s157 = smul.addr %s153, 128
          %s158 = scalar_lea.hbm %s0, %s157
          %s159 = sshll.u32 %s152, 4
          %s160 = int_to_ptr.vmem [resolvable:$true] %s159
          %165 = dma.hbm_to_vmem [thread:$0]  %s158, 256, %s160, %s149, 128, 128, 8
        $region28: #{tpu_custom_call.1} parent=23 // pred_fallthru
          _
      $region24: #{tpu_custom_call.1} parent=5 // pred_fallthru
        _
      %p166 = scmp.le.s32.totalorder 1, %s16
      %p167 = scmp.lt.s32.totalorder %s16, 5
      %p168 = pnand %p166, %p167
      %p169 = pneg %p168
      // Predicated region
      $region29: #{tpu_custom_call.1} parent=5 // pred_check
        _
      $region30: #{tpu_custom_call.1} parent=5 // pred_check_branch
        %171 = sbr.rel (%p168) target = $region32
      $region31: #{tpu_custom_call.1} parent=5 // pred_region
        %s172 = ssub.s32 %s16, 1
        %s173 = sand.u32 %s29, 1
        %s174 = scalar_lea.sflag [#allocation3], %s173
        %s175 = sand.u32 %s29, 1
        %s176 = smul.addr %s175, 16
        %s177 = scalar_lea.vmem [#allocation2], %s176
        // Predicated region
        $region33: #{tpu_custom_call.1} parent=31 // pred_check
          %p178 = pneg %p42
        $region34: #{tpu_custom_call.1} parent=31 // pred_check_branch
          %180 = sbr.rel (%p178) target = $region36
        $region35: #{tpu_custom_call.1} parent=31 // pred_region
          %181 = dma.done %s174, 256
        $region36: #{tpu_custom_call.1} parent=31 // pred_fallthru
          _
        // Predicated region
        $region37: #{tpu_custom_call.1} parent=31 // pred_check
          %p182 = pneg %p63
        $region38: #{tpu_custom_call.1} parent=31 // pred_check_branch
          %184 = sbr.rel (%p182) target = $region40
        $region39: #{tpu_custom_call.1} parent=31 // pred_region
          %185 = dma.done [#allocation6], 2048
        $region40: #{tpu_custom_call.1} parent=31 // pred_fallthru
          _
        %s186 = sand.u32 %s29, 1
        %s187 = scalar_lea.sflag [#allocation3], %s186
        %s188 = sand.u32 %s29, 1
        %s189 = smul.addr %s188, 16
        %s190 = scalar_lea.vmem [#allocation2], %s189
        %p191 = pneg %p42
        %p192 = pneg %p39
        %p193 = pneg %p63
        %p194 = pneg %p60
        %p195 = pneg %p84
        %p196 = pneg %p81
        %p197 = pneg %p110
        %p198 = pneg %p107
        %s199 = sand.u32 %s97, 1
        %s200 = scalar_lea.sflag [#allocation4], %s199
        %s201 = sand.u32 %s97, 1
        %s202 = smul.addr %s201, 16
        %s203 = scalar_lea.vmem [#allocation7], %s202
        %s204 = smul.u32 2, %s21
        %s205 = smul.u32 2, %s21
        %v206 = vld [vmem:[%s177] sm:$0xff]
        %v207 = vld [vmem:[%s177 + $0x8] sm:$0xff]
        %v208 = vld [vmem:[#allocation5] sm:$0xff]
        %v209 = vld [vmem:[#allocation5 + $0x8] sm:$0xff]
        %v210 = vld [vmem:[#allocation5 + $0x10] sm:$0xff]
        %v211 = vld [vmem:[#allocation5 + $0x18] sm:$0xff]
        %v212 = vld [vmem:[#allocation5 + $0x20] sm:$0xff]
        %v213 = vld [vmem:[#allocation5 + $0x28] sm:$0xff]
        %v214 = vld [vmem:[#allocation5 + $0x30] sm:$0xff]
        %v215 = vld [vmem:[#allocation5 + $0x38] sm:$0xff]
        %v216 = vld [vmem:[#allocation5 + $0x40] sm:$0xff]
        %v217 = vld [vmem:[#allocation5 + $0x48] sm:$0xff]
        %v218 = vld [vmem:[#allocation5 + $0x50] sm:$0xff]
        %v219 = vld [vmem:[#allocation5 + $0x58] sm:$0xff]
        %v220 = vld [vmem:[#allocation5 + $0x60] sm:$0xff]
        %v221 = vld [vmem:[#allocation5 + $0x68] sm:$0xff]
        %v222 = vld [vmem:[#allocation5 + $0x70] sm:$0xff]
        %v223 = vld [vmem:[#allocation5 + $0x78] sm:$0xff]
        %v224 = vld [vmem:[%s2] sm:$0x1]
        %v226 = vlaneseq
        %v227 = vshrl.u32 %v226, 7
        %v228 = vsub.s32 0, %v227
        %v229 = vrot.slane %v224, %v228
        %231 = vmatprep.subr.mxu0 0.0
        %232 = vmatpush1.msra.mxu0 %v223
        %233 = vmatprep.subr.mxu0 0.0
        %234 = vmatpush1.msra.mxu0 %v222
        %235 = vmatprep.subr.mxu0 0.0
        %236 = vmatpush1.msra.mxu0 %v221
        %237 = vmatprep.subr.mxu0 0.0
        %238 = vmatpush1.msra.mxu0 %v220
        %239 = vmatprep.subr.mxu0 0.0
        %240 = vmatpush1.msra.mxu0 %v219
        %241 = vmatprep.subr.mxu0 0.0
        %242 = vmatpush1.msra.mxu0 %v218
        %243 = vmatprep.subr.mxu0 0.0
        %244 = vmatpush1.msra.mxu0 %v217
        %245 = vmatprep.subr.mxu0 0.0
        %246 = vmatpush1.msra.mxu0 %v216
        %247 = vmatprep.subr.mxu0 0.0
        %248 = vmatpush1.msra.mxu0 %v215
        %249 = vmatprep.subr.mxu0 0.0
        %250 = vmatpush1.msra.mxu0 %v214
        %251 = vmatprep.subr.mxu0 0.0
        %252 = vmatpush1.msra.mxu0 %v213
        %253 = vmatprep.subr.mxu0 0.0
        %254 = vmatpush1.msra.mxu0 %v212
        %255 = vmatprep.subr.mxu0 0.0
        %256 = vmatpush1.msra.mxu0 %v211
        %257 = vmatprep.subr.mxu0 0.0
        %258 = vmatpush1.msra.mxu0 %v210
        %259 = vmatprep.subr.mxu0 0.0
        %260 = vmatpush1.msra.mxu0 %v209
        %261 = vmatprep.subr.mxu0 0.0
        %262 = vmatpush1.msra.mxu0 %v208
        %263 = vmatprep.subr.mxu0 0.0
        %264 = vmatpush2.msra.mxu0 0.0
        %265 = vmatprep.subr.mxu0 0.0
        %266 = vmatpush2.msra.mxu0 0.0
        %267 = vmatprep.subr.mxu0 0.0
        %268 = vmatpush2.msra.mxu0 0.0
        %269 = vmatprep.subr.mxu0 0.0
        %270 = vmatpush2.msra.mxu0 0.0
        %271 = vmatprep.subr.mxu0 0.0
        %272 = vmatpush2.msra.mxu0 0.0
        %273 = vmatprep.subr.mxu0 0.0
        %274 = vmatpush2.msra.mxu0 0.0
        %275 = vmatprep.subr.mxu0 0.0
        %276 = vmatpush2.msra.mxu0 0.0
        %277 = vmatprep.subr.mxu0 0.0
        %278 = vmatpush2.msra.mxu0 0.0
        %279 = vmatprep.subr.mxu0 0.0
        %280 = vmatpush2.msra.mxu0 0.0
        %281 = vmatprep.subr.mxu0 0.0
        %282 = vmatpush2.msra.mxu0 0.0
        %283 = vmatprep.subr.mxu0 0.0
        %284 = vmatpush2.msra.mxu0 0.0
        %285 = vmatprep.subr.mxu0 0.0
        %286 = vmatpush2.msra.mxu0 0.0
        %287 = vmatprep.subr.mxu0 0.0
        %288 = vmatpush2.msra.mxu0 0.0
        %289 = vmatprep.subr.mxu0 0.0
        %290 = vmatpush2.msra.mxu0 0.0
        %291 = vmatprep.subr.mxu0 0.0
        %292 = vmatpush2.msra.mxu0 0.0
        %293 = vmatprep.subr.mxu0 0.0
        %294 = vmatpush2.msra.mxu0 0.0
        %295 = vmatprep.mubr.f32.mxu0 0.0
        %296 = vmatmul.mubr.f32.gmra.mxu0 %v206
        %v297 = vpop.f32.mrf.mxu0
        %v298 = vadd.f32 %v229, %v297
        %v299 = vpop.f32.mrf.mxu0
        %300 = vmatprep.mubr.f32.mxu0 0.0
        %301 = vmatmul.mubr.f32.gmra.mxu0 %v207
        %v302 = vpop.f32.mrf.mxu0
        %v303 = vadd.f32 %v229, %v302
        %v304 = vpop.f32.mrf.mxu0
        %305 = vdwg.mxu0
        %v306 = vtanh.pop %v298
        %v307 = vtanh.pop %v303
        %v308 = vand.u32 2147483647, %v206
        %v309 = vand.u32 2147483647, %v207
        %310 = vadd.xlane.f32.xlu0 %v308
        %v311 = vpop.xlane.xlu0 %310
        %312 = vadd.xlane.f32.xlu0 %v309
        %v313 = vpop.xlane.xlu0 %312
        %vm314 = vcmp.ne.f32.partialorder %v311, 0.0
        %vm315 = vcmp.ne.f32.partialorder %v313, 0.0
        %v316 = vmul.f32 %v306, 1.442695
        %v317 = vpow.pop %v316
        %v318 = vmul.f32 %v307, 1.442695
        %v319 = vpow.pop %v318
        %v320 = vsel %vm314, 1, 0
        %v321 = vsel %vm315, 1, 0
        %vm322 = vcmp.eq.s32.totalorder %v320, 1
        %vm323 = vcmp.eq.s32.totalorder %v321, 1
        %v324 = vsel %vm322, %v317, 0.0
        %v325 = vsel %vm323, %v319, 0.0
        %v326 = vrot.slane %v324, 4
        %v327 = vadd.f32 %v324, %v326
        %v328 = vrot.slane %v327, 2
        %v329 = vadd.f32 %v327, %v328
        %v330 = vrot.slane %v329, 1
        %v331 = vadd.f32 %v329, %v330
        %v332 = vrot.slane %v325, 4
        %v333 = vadd.f32 %v325, %v332
        %v334 = vrot.slane %v333, 2
        %v335 = vadd.f32 %v333, %v334
        %v336 = vrot.slane %v335, 1
        %v337 = vadd.f32 %v335, %v336
        %vm338 = vcmp.gt.f32.partialorder %v331, 0.0
        %vm339 = vcmp.gt.f32.partialorder %v337, 0.0
        %v340 = vsel %vm338, %v331, 1.0
        %v341 = vsel %vm339, %v337, 1.0
        %v342 = vrcp.pop %v340
        %v343 = vrcp.pop %v341
        %v344 = vmul.f32 %v324, %v342
        %v345 = vmul.f32 %v325, %v343
        %v346 = vmul.f32 %v344, %v206
        %v347 = vmul.f32 %v345, %v207
        %348 = vst [vmem:[%s203] sm:$0xff] %v346
        %349 = vst [vmem:[%s203 + $0x8] sm:$0xff] %v347
        %s350 = sand.u32 %s97, 1
        %s351 = scalar_lea.sflag [#allocation4], %s350
        %s352 = sand.u32 %s97, 1
        %s353 = smul.addr %s352, 16
        %s354 = scalar_lea.vmem [#allocation7], %s353
        // Predicated region
        $region41: #{tpu_custom_call.1} parent=31 // pred_check
          %p355 = pneg %p107
        $region42: #{tpu_custom_call.1} parent=31 // pred_check_branch
          %357 = sbr.rel (%p355) target = $region44
        $region43: #{tpu_custom_call.1} parent=31 // pred_region
          %s358 = smul.u32 2, %s21
          %s360 = ssub.s32 256, 256
          %361 = vsyncadd %s351, %s360
          %s362 = smul.addr %s358, 128
          %s363 = scalar_lea.hbm %s3, %s362
          %s364 = sshll.u32 %s354, 4
          %s365 = int_to_ptr.vmem [resolvable:$true] %s364
          %370 = dma.vmem_to_hbm [thread:$0]  %s365, 256, %s363, %s351, 128, 128, 8
        $region44: #{tpu_custom_call.1} parent=31 // pred_fallthru
          _
      $region32: #{tpu_custom_call.1} parent=5 // pred_fallthru
        _
      %p371 = scmp.le.s32.totalorder 2, %s16
      // Predicated region
      $region45: #{tpu_custom_call.1} parent=5 // pred_check
        %p372 = pneg %p371
      $region46: #{tpu_custom_call.1} parent=5 // pred_check_branch
        %374 = sbr.rel (%p372) target = $region48
      $region47: #{tpu_custom_call.1} parent=5 // pred_region
        %s375 = ssub.s32 %s16, 2
        // Predicated region
        $region49: #{tpu_custom_call.1} parent=47 // pred_check
          %p376 = pneg %p113
        $region50: #{tpu_custom_call.1} parent=47 // pred_check_branch
          %378 = sbr.rel (%p376) target = $region52
        $region51: #{tpu_custom_call.1} parent=47 // pred_region
          %s379 = sand.u32 %s98, 1
          %s380 = scalar_lea.sflag [#allocation4], %s379
          %s381 = sand.u32 %s98, 1
          %s382 = smul.addr %s381, 16
          %s383 = scalar_lea.vmem [#allocation7], %s382
          %384 = dma.done %s380, 256
        $region52: #{tpu_custom_call.1} parent=47 // pred_fallthru
          _
      $region48: #{tpu_custom_call.1} parent=5 // pred_fallthru
        _
    $region6: #{tpu_custom_call.1} parent=1 // loop_footer
      %s20 = sadd.s32 1, %s16
    $region7: #{tpu_custom_call.1} parent=1 // loop_footer_branch
      %15 = sbr.rel target = $region3
    $region8: #{tpu_custom_call.1} parent=1 // loop_exit
      _
    %385 = vsyncpa [#allocation3], 1
    %s386 = scalar_lea.sflag [#allocation3], 1
    %387 = vsyncpa %s386, 1
    %388 = vsyncpa [#allocation6], 1
    %389 = vsyncpa [#allocation4], 1
    %s390 = scalar_lea.sflag [#allocation4], 1
    %391 = vsyncpa %s390, 1

</llo_original>
